<compile_context>
chip_gen: v7x
topology: tpu7x:2x2x1
jax: 0.10.0
libtpu: 0.0.40
codegen_flags: <defaults>
</compile_context>

<pallas_src>
import functools

import jax
import jax.numpy as jnp
from jax.experimental import pallas as pl
from jax.experimental.pallas import tpu as pltpu

_NEG_BIG = -1e30  # finite "-inf" to avoid inf-inf NaNs in the online max


def _round_up(x, m):
    return (x + m - 1) // m * m


def _cdiv(a, b):
    return (a + b - 1) // b


def _tpu_params():
    """Generation-aware tiling / VMEM caps (conservative v7x-safe defaults)."""
    kind = ""
    try:
        kind = jax.devices()[0].device_kind.lower()
    except Exception:
        pass
    # default: v7x-safe (64 MiB per-TC VMEM, 2 TCs/chip)
    p = dict(slab_bytes=8 << 20, vmem_cap=48 << 20, tile_b_cap=320, n_split=2)
    if "v7" in kind:
        p = dict(slab_bytes=8 << 20, vmem_cap=48 << 20, tile_b_cap=320, n_split=2)
    elif "v6" in kind:                         # v6e / Trillium: 128 MiB VMEM
        p = dict(slab_bytes=24 << 20, vmem_cap=96 << 20, tile_b_cap=640, n_split=1)
    elif "v5" in kind and "lite" in kind:      # v5e: 128 MiB VMEM, ridge ~240
        p = dict(slab_bytes=16 << 20, vmem_cap=96 << 20, tile_b_cap=256, n_split=1)
    elif "v5" in kind or "v4" in kind:         # v5p / v4
        p = dict(slab_bytes=16 << 20, vmem_cap=96 << 20, tile_b_cap=512, n_split=1)
    elif "v3" in kind or "v2" in kind:         # small-VMEM legacy parts
        p = dict(slab_bytes=4 << 20, vmem_cap=14 << 20, tile_b_cap=128, n_split=1)
    return p


def prepare_cluster_memory(features):
    """Cast the cluster-memory bank to bf16 ONCE.

    Store the bank like this in training state so the forward never
    re-reads/convert the whole (N, D) buffer per call (that wrapper-side copy
    was ~3x the kernel's own per-batch-tile feature read).
    """
    return features.astype(jnp.bfloat16)


def _cm_loss_kernel(x_ref, feat_ref, tgt_ref, lse_ref, tlogit_ref,
                    m_sc, l_sc, t_sc, xn_sc,
                    *, inv_temp, n_valid, tile_n, tiles_per_split, need_mask):
    # x_ref    : (TILE_B, D)  raw inputs (f32)
    # feat_ref : (TILE_N, D)  cluster memory slab (bf16)
    # tgt_ref  : (TILE_B, 1)  int32 targets
    # lse_ref  : (TILE_B, 1)  per-(split, sample) partial logsumexp (f32)
    # tlogit_ref:(TILE_B, 1)  per-(split, sample) partial target logit (f32)
    s = pl.program_id(1)          # split index along the cluster axis
    k = pl.program_id(2)          # N tile within this split (reduction axis)
    n_k = pl.num_programs(2)

    @pl.when(k == 0)
    def _init():
        x = x_ref[...].astype(jnp.float32)
        sq = jnp.sum(x * x, axis=1, keepdims=True)
        inv_norm = jax.lax.rsqrt(jnp.maximum(sq, 1e-24))
        # F.normalize with 1/temp folded in (one (B,D) multiply instead of a
        # (B,N) divide over the logits)
        xn_sc[...] = (x * (inv_norm * inv_temp)).astype(xn_sc.dtype)
        m_sc[...] = jnp.full_like(m_sc, _NEG_BIG)
        l_sc[...] = jnp.zeros_like(l_sc)
        t_sc[...] = jnp.zeros_like(t_sc)

    # (TILE_B, D) x (TILE_N, D)^T -> (TILE_B, TILE_N); contraction on D.
    # Features stay (N, D) in HBM; pre-transposing to (D, N) only pays if a
    # bundle dump shows Mosaic inserting vxpose before the MXU push.
    logits = jax.lax.dot_general(
        xn_sc[...], feat_ref[...],
        dimension_numbers=(((1,), (1,)), ((), ())),
        preferred_element_type=jnp.float32)

    gtile = s * tiles_per_split + k
    col = jax.lax.broadcasted_iota(jnp.int32, (1, tile_n), 1)
    gcol = col + gtile * tile_n                 # (1, TILE_N) global column ids
    # broadcast compare (no (TILE_B, TILE_N) int32 materialization); padding
    # and phantom columns can never match since targets < N <= gcol there.
    is_target = gcol == tgt_ref[...]

    if need_mask:
        # ragged last tile / phantom tiles of this split: mask padding columns
        logits_m = jnp.where(gcol < n_valid, logits, _NEG_BIG)
    else:
        logits_m = logits

    # online softmax update
    m_old = m_sc[...]
    m_new = jnp.maximum(m_old, jnp.max(logits_m, axis=1, keepdims=True))
    l_sc[...] = (l_sc[...] * jnp.exp(m_old - m_new)
                 + jnp.sum(jnp.exp(logits_m - m_new), axis=1, keepdims=True))
    m_sc[...] = m_new
    # exact (pre-shift) target logit; the target column lives in exactly one
    # tile of exactly one split
    t_sc[...] += jnp.sum(jnp.where(is_target, logits, 0.0),
                         axis=1, keepdims=True)

    @pl.when(k == n_k - 1)
    def _finalize():
        lse_ref[...] = m_sc[...] + jnp.log(l_sc[...])
        tlogit_ref[...] = t_sc[...]


def cluster_memory_forward(inputs, targets, features, temp, *,
                           tile_b=None, tile_n=None, n_split=None,
                           feature_buffers=None):
    """Forward loss of ClusterMemory (cross-entropy over the cluster memory).

    inputs  : (B, D) float32
    targets : (B,)   int32 in [0, N)
    features: (N, D) cluster memory buffer (f32 or, preferably, bf16 via
              prepare_cluster_memory so no per-call bank copy happens)
    temp    : python float temperature
    """
    B, D = inputs.shape
    N, Df = features.shape
    assert D == Df

    gen = _tpu_params()

    if tile_b is None:
        tile_b = min(_round_up(B, 16), gen["tile_b_cap"])
    tile_b = max(16, _round_up(int(tile_b), 16))

    if tile_n is None:
        cap = max(128, (gen["slab_bytes"] // max(2 * D, 1)) // 128 * 128)
        tile_n = min(_round_up(N, 128), cap)
    tile_n = max(128, _round_up(int(tile_n), 128))

    def _vmem_est(tb, tn):
        return (2 * tn * D * 2          # double-buffered bf16 feature slabs
                + 2 * tb * D * 4        # double-buffered f32 input tiles
                + 8 * tb * 4            # targets + 2 outputs (double-buffered)
                + tb * (3 * 4 + D * 2)  # m/l/t + xn scratch
                + 6 * tb * tn * 4)      # logits / exp / select temporaries

    # shrink until the estimate (plus margin) fits this generation's VMEM cap
    while _vmem_est(tile_b, tile_n) + (4 << 20) > gen["vmem_cap"] and tile_n > 128:
        tile_n = max(128, ((tile_n // 2) // 128) * 128)
    while _vmem_est(tile_b, tile_n) + (4 << 20) > gen["vmem_cap"] and tile_b > 16:
        tile_b = max(16, _round_up(tile_b // 2, 16))

    num_b = _cdiv(B, tile_b)
    n_tiles = _cdiv(N, tile_n)

    if n_split is None:
        # split the cluster axis across TensorCores only when the whole batch
        # fits in one tile (otherwise the parallel batch axis feeds both cores)
        n_split = gen["n_split"] if num_b == 1 else 1
    n_split = max(1, min(int(n_split), n_tiles))
    tiles_per_split = _cdiv(n_tiles, n_split)
    need_mask = (N % tile_n != 0) or (n_split * tiles_per_split != n_tiles)

    x = inputs.astype(jnp.float32)
    tgt2d = targets.astype(jnp.int32).reshape(B, 1)
    # Bank stays where it is: no padding, only cast if the caller passed f32.
    feat = features if features.dtype == jnp.bfloat16 \
        else features.astype(jnp.bfloat16)

    vmem_limit = int(min(max(_vmem_est(tile_b, tile_n) + (8 << 20), 24 << 20),
                         gen["vmem_cap"]))

    kernel = functools.partial(
        _cm_loss_kernel,
        inv_temp=float(1.0 / float(temp)),
        n_valid=N,
        tile_n=tile_n,
        tiles_per_split=tiles_per_split,
        need_mask=need_mask)

    feat_kwargs = {}
    if feature_buffers is not None:
        # only if an xprof trace shows feature-DMA gaps at tile boundaries
        feat_kwargs = dict(pipeline_mode=pl.Buffered(int(feature_buffers)))

    def feat_map(i, s, k):
        t = s * tiles_per_split + k
        return (jnp.minimum(t, n_tiles - 1), 0)   # clamp phantom tiles

    lse_p, tlogit_p = pl.pallas_call(
        kernel,
        out_shape=(jax.ShapeDtypeStruct((n_split, B, 1), jnp.float32),
                   jax.ShapeDtypeStruct((n_split, B, 1), jnp.float32)),
        grid_spec=pltpu.PrefetchScalarGridSpec(
            num_scalar_prefetch=0,
            grid=(num_b, n_split, tiles_per_split),
            in_specs=[
                pl.BlockSpec((tile_b, D), lambda i, s, k: (i, 0)),   # inputs
                pl.BlockSpec((tile_n, D), feat_map, **feat_kwargs),  # features
                pl.BlockSpec((tile_b, 1), lambda i, s, k: (i, 0)),   # targets
            ],
            out_specs=[
                pl.BlockSpec((None, tile_b, 1), lambda i, s, k: (s, i, 0)),
                pl.BlockSpec((None, tile_b, 1), lambda i, s, k: (s, i, 0)),
            ],
            scratch_shapes=[
                pltpu.VMEM((tile_b, 1), jnp.float32),   # running max m
                pltpu.VMEM((tile_b, 1), jnp.float32),   # running sum-exp l
                pltpu.VMEM((tile_b, 1), jnp.float32),   # target logit t
                pltpu.VMEM((tile_b, D), jnp.bfloat16),  # normalized/scaled x
            ]),
        compiler_params=pltpu.CompilerParams(
            dimension_semantics=("parallel", "parallel", "arbitrary"),
            vmem_limit_bytes=vmem_limit),
    )(x, feat, tgt2d)

    # combine per-split partial softmax statistics (trivial when n_split == 1)
    lse = jax.nn.logsumexp(lse_p[:, :, 0], axis=0)    # (B,)
    tgt_logit = jnp.sum(tlogit_p[:, :, 0], axis=0)    # (B,)
    per_sample = lse - tgt_logit                      # CE_b = lse_b - logit_tgt_b
    # F.cross_entropy default reduction: mean over the batch
    return jnp.mean(per_sample)


def _reference_forward(inputs, targets, features, temp):
    xn = inputs / jnp.linalg.norm(inputs, axis=1, keepdims=True)
    logits = (xn @ features.astype(jnp.float32).T) / temp
    logp = jax.nn.log_softmax(logits, axis=1)
    per_sample = -jnp.take_along_axis(logp, targets[:, None], axis=1)[:, 0]
    return jnp.mean(per_sample)


if __name__ == "__main__":
    temp = 0.05
    key = jax.random.PRNGKey(0)

    # --- test 1: single tile in both axes, raw f32 bank -------------------
    B, D, N = 8, 128, 16
    k1, k2, k3 = jax.random.split(key, 3)
    inputs = jax.random.normal(k1, (B, D), dtype=jnp.float32)
    targets = jax.random.randint(k2, (B,), 0, N, dtype=jnp.int32)
    feats = jax.random.normal(k3, (N, D), dtype=jnp.float32)
    features = feats / jnp.linalg.norm(feats, axis=1, keepdims=True)

    loss = cluster_memory_forward(inputs, targets, features, temp)
    jax.block_until_ready(loss)
    ref = _reference_forward(inputs, targets, features, temp)
    # features streamed as bf16 -> relax tolerance vs. the pure-f32 reference
    assert jnp.allclose(loss, ref, rtol=5e-2, atol=5e-2), (loss, ref)

    # --- test 2: ragged batch, ragged N, multiple N tiles, persistent bf16
    #             bank, and the 2-way cluster-axis split + combine path ------
    B2, D2, N2 = 12, 256, 300
    k4, k5, k6 = jax.random.split(jax.random.PRNGKey(1), 3)
    inputs2 = jax.random.normal(k4, (B2, D2), dtype=jnp.float32)
    targets2 = jax.random.randint(k5, (B2,), 0, N2, dtype=jnp.int32)
    feats2 = jax.random.normal(k6, (N2, D2), dtype=jnp.float32)
    features2 = feats2 / jnp.linalg.norm(feats2, axis=1, keepdims=True)
    bank2 = prepare_cluster_memory(features2)          # stored bf16 once

    loss2 = cluster_memory_forward(inputs2, targets2, bank2, temp,
                                   tile_n=128, n_split=2)
    jax.block_until_ready(loss2)
    ref2 = _reference_forward(inputs2, targets2, features2, temp)
    assert jnp.allclose(loss2, ref2, rtol=5e-2, atol=5e-2), (loss2, ref2)

    # --- test 3: fully divisible shapes (mask specialized away), auto split --
    B3, D3, N3 = 24, 128, 256
    k7, k8, k9 = jax.random.split(jax.random.PRNGKey(2), 3)
    inputs3 = jax.random.normal(k7, (B3, D3), dtype=jnp.float32)
    targets3 = jax.random.randint(k8, (B3,), 0, N3, dtype=jnp.int32)
    feats3 = jax.random.normal(k9, (N3, D3), dtype=jnp.float32)
    features3 = feats3 / jnp.linalg.norm(feats3, axis=1, keepdims=True)
    bank3 = prepare_cluster_memory(features3)

    loss3 = cluster_memory_forward(inputs3, targets3, bank3, temp, tile_n=128)
    jax.block_until_ready(loss3)
    ref3 = _reference_forward(inputs3, targets3, features3, temp)
    assert jnp.allclose(loss3, ref3, rtol=5e-2, atol=5e-2), (loss3, ref3)

    print("KERNEL_OK")
</pallas_src>

<mosaic_0001>
module attributes {stable_mosaic.version = 11 : i64} {
  func.func @_cm_loss_kernel(%arg0: i32, %arg1: i32, %arg2: i32, %arg3: memref<16x128xf32, #tpu.memory_space<vmem>>, %arg4: memref<128x128xbf16, #tpu.memory_space<vmem>>, %arg5: memref<16x1xi32, #tpu.memory_space<vmem>>, %arg6: memref<1x16x1xf32, #tpu.memory_space<vmem>>, %arg7: memref<1x16x1xf32, #tpu.memory_space<vmem>>, %arg8: memref<16x1xf32, #tpu.memory_space<vmem>>, %arg9: memref<16x1xf32, #tpu.memory_space<vmem>>, %arg10: memref<16x1xf32, #tpu.memory_space<vmem>>, %arg11: memref<16x128xbf16, #tpu.memory_space<vmem>>) attributes {dimension_semantics = [#tpu.dimension_semantics<parallel>, #tpu.dimension_semantics<parallel>, #tpu.dimension_semantics<arbitrary>], iteration_bounds = array<i64: 1, 1, 1>, scalar_prefetch = 0 : i64, scratch_operands = 4 : i64, tpu.core_type = #tpu.core_type<tc>, window_params = [{transform_indices = @transform_0, window_bounds = array<i64: 16, 128>}, {transform_indices = @transform_1, window_bounds = array<i64: 128, 128>}, {transform_indices = @transform_2, window_bounds = array<i64: 16, 1>}, {transform_indices = @transform_3, window_bounds = array<i64: 1, 16, 1>}, {transform_indices = @transform_4, window_bounds = array<i64: 1, 16, 1>}]} {
    %c0_i32 = arith.constant 0 : i32
    %0 = arith.cmpi eq, %arg2, %c0_i32 : i32
    %1 = arith.extui %0 : i1 to i32
    %c0_i32_0 = arith.constant 0 : i32
    %2 = arith.cmpi ne, %1, %c0_i32_0 : i32
    scf.if %2 {
      %c0_25 = arith.constant 0 : index
      %c0_26 = arith.constant 0 : index
      %48 = vector.load %arg3[%c0_25, %c0_26] : memref<16x128xf32, #tpu.memory_space<vmem>>, vector<16x128xf32>
      %49 = arith.mulf %48, %48 : vector<16x128xf32>
      %cst_27 = arith.constant dense<0.000000e+00> : vector<16xf32>
      %50 = vector.multi_reduction <add>, %49, %cst_27 [1] : vector<16x128xf32> to vector<16xf32>
      %51 = vector.shape_cast %50 : vector<16xf32> to vector<16x1xf32>
      %cst_28 = arith.constant 1.000000e-24 : f32
      %52 = vector.broadcast %cst_28 : f32 to vector<16x1xf32>
      %53 = arith.maximumf %51, %52 : vector<16x1xf32>
      %54 = math.rsqrt %53 : vector<16x1xf32>
      %cst_29 = arith.constant 2.000000e+01 : f32
      %55 = vector.broadcast %cst_29 : f32 to vector<16x1xf32>
      %56 = arith.mulf %54, %55 : vector<16x1xf32>
      %57 = vector.broadcast %56 : vector<16x1xf32> to vector<16x128xf32>
      %58 = arith.mulf %48, %57 : vector<16x128xf32>
      %59 = arith.truncf %58 : vector<16x128xf32> to vector<16x128xbf16>
      %c0_30 = arith.constant 0 : index
      %c0_31 = arith.constant 0 : index
      %60 = vector.load %arg11[%c0_30, %c0_31] : memref<16x128xbf16, #tpu.memory_space<vmem>>, vector<16x128xbf16>
      tpu.vector_store %arg11[%c0_30, %c0_31], %59 {strides = array<i32>} : memref<16x128xbf16, #tpu.memory_space<vmem>>, vector<16x128xbf16>,
      %cst_32 = arith.constant -1.000000e+30 : f32
      %61 = vector.broadcast %cst_32 : f32 to vector<16x1xf32>
      %c0_33 = arith.constant 0 : index
      %c0_34 = arith.constant 0 : index
      %62 = vector.load %arg8[%c0_33, %c0_34] : memref<16x1xf32, #tpu.memory_space<vmem>>, vector<16x1xf32>
      tpu.vector_store %arg8[%c0_33, %c0_34], %61 {strides = array<i32>} : memref<16x1xf32, #tpu.memory_space<vmem>>, vector<16x1xf32>,
      %cst_35 = arith.constant 0.000000e+00 : f32
      %63 = vector.broadcast %cst_35 : f32 to vector<16x1xf32>
      %c0_36 = arith.constant 0 : index
      %c0_37 = arith.constant 0 : index
      %64 = vector.load %arg9[%c0_36, %c0_37] : memref<16x1xf32, #tpu.memory_space<vmem>>, vector<16x1xf32>
      tpu.vector_store %arg9[%c0_36, %c0_37], %63 {strides = array<i32>} : memref<16x1xf32, #tpu.memory_space<vmem>>, vector<16x1xf32>,
      %cst_38 = arith.constant 0.000000e+00 : f32
      %65 = vector.broadcast %cst_38 : f32 to vector<16x1xf32>
      %c0_39 = arith.constant 0 : index
      %c0_40 = arith.constant 0 : index
      %66 = vector.load %arg10[%c0_39, %c0_40] : memref<16x1xf32, #tpu.memory_space<vmem>>, vector<16x1xf32>
      tpu.vector_store %arg10[%c0_39, %c0_40], %65 {strides = array<i32>} : memref<16x1xf32, #tpu.memory_space<vmem>>, vector<16x1xf32>,
    } else {
    }
    %c0 = arith.constant 0 : index
    %c0_1 = arith.constant 0 : index
    %3 = vector.load %arg11[%c0, %c0_1] : memref<16x128xbf16, #tpu.memory_space<vmem>>, vector<16x128xbf16>
    %c0_2 = arith.constant 0 : index
    %c0_3 = arith.constant 0 : index
    %4 = vector.load %arg4[%c0_2, %c0_3] : memref<128x128xbf16, #tpu.memory_space<vmem>>, vector<128x128xbf16>
    %cst = arith.constant dense<0.000000e+00> : vector<16x128xf32>
    %5 = tpu.matmul %3, %4, %cst {dimension_numbers = #tpu.dot_dimension_numbers<[1], [1], [0], [0], [0, 0, 1, 0], [], []>} : vector<16x128xbf16>, vector<128x128xbf16>, vector<16x128xf32> -> vector<16x128xf32>
    %c1_i32 = arith.constant 1 : i32
    %6 = arith.muli %arg1, %c1_i32 : i32
    %7 = arith.addi %6, %arg2 : i32
    %8 = tpu.iota {dimensions = array<i32: 1>} : vector<1x128xi32>
    %c128_i32 = arith.constant 128 : i32
    %9 = arith.muli %7, %c128_i32 : i32
    %10 = vector.broadcast %9 : i32 to vector<1x128xi32>
    %11 = arith.addi %8, %10 : vector<1x128xi32>
    %c0_4 = arith.constant 0 : index
    %c0_5 = arith.constant 0 : index
    %12 = vector.load %arg5[%c0_4, %c0_5] : memref<16x1xi32, #tpu.memory_space<vmem>>, vector<16x1xi32>
    %13 = vector.broadcast %11 : vector<1x128xi32> to vector<16x128xi32>
    %14 = vector.broadcast %12 : vector<16x1xi32> to vector<16x128xi32>
    %15 = arith.cmpi eq, %13, %14 : vector<16x128xi32>
    %c16_i32 = arith.constant 16 : i32
    %16 = vector.broadcast %c16_i32 : i32 to vector<1x128xi32>
    %17 = arith.cmpi slt, %11, %16 : vector<1x128xi32>
    %cst_6 = arith.constant -1.000000e+30 : f32
    %18 = vector.shape_cast %17 : vector<1x128xi1> to vector<1x128xi1>
    %19 = vector.broadcast %18 : vector<1x128xi1> to vector<16x128xi1>
    %20 = vector.broadcast %cst_6 : f32 to vector<16x128xf32>
    %21 = arith.select %19, %5, %20 : vector<16x128xi1>, vector<16x128xf32>
    %c0_7 = arith.constant 0 : index
    %c0_8 = arith.constant 0 : index
    %22 = vector.load %arg8[%c0_7, %c0_8] : memref<16x1xf32, #tpu.memory_space<vmem>>, vector<16x1xf32>
    %cst_9 = arith.constant dense<0xFF800000> : vector<16xf32>
    %23 = vector.multi_reduction <maximumf>, %21, %cst_9 [1] : vector<16x128xf32> to vector<16xf32>
    %24 = vector.shape_cast %23 : vector<16xf32> to vector<16x1xf32>
    %25 = arith.maximumf %22, %24 : vector<16x1xf32>
    %c0_10 = arith.constant 0 : index
    %c0_11 = arith.constant 0 : index
    %26 = vector.load %arg9[%c0_10, %c0_11] : memref<16x1xf32, #tpu.memory_space<vmem>>, vector<16x1xf32>
    %27 = arith.subf %22, %25 : vector<16x1xf32>
    %28 = math.exp %27 : vector<16x1xf32>
    %29 = arith.mulf %26, %28 : vector<16x1xf32>
    %30 = vector.broadcast %25 : vector<16x1xf32> to vector<16x128xf32>
    %31 = arith.subf %21, %30 : vector<16x128xf32>
    %32 = math.exp %31 : vector<16x128xf32>
    %cst_12 = arith.constant dense<0.000000e+00> : vector<16xf32>
    %33 = vector.multi_reduction <add>, %32, %cst_12 [1] : vector<16x128xf32> to vector<16xf32>
    %34 = vector.shape_cast %33 : vector<16xf32> to vector<16x1xf32>
    %35 = arith.addf %29, %34 : vector<16x1xf32>
    %c0_13 = arith.constant 0 : index
    %c0_14 = arith.constant 0 : index
    %36 = vector.load %arg9[%c0_13, %c0_14] : memref<16x1xf32, #tpu.memory_space<vmem>>, vector<16x1xf32>
    tpu.vector_store %arg9[%c0_13, %c0_14], %35 {strides = array<i32>} : memref<16x1xf32, #tpu.memory_space<vmem>>, vector<16x1xf32>,
    %c0_15 = arith.constant 0 : index
    %c0_16 = arith.constant 0 : index
    %37 = vector.load %arg8[%c0_15, %c0_16] : memref<16x1xf32, #tpu.memory_space<vmem>>, vector<16x1xf32>
    tpu.vector_store %arg8[%c0_15, %c0_16], %25 {strides = array<i32>} : memref<16x1xf32, #tpu.memory_space<vmem>>, vector<16x1xf32>,
    %c0_17 = arith.constant 0 : index
    %c0_18 = arith.constant 0 : index
    %38 = vector.load %arg10[%c0_17, %c0_18] : memref<16x1xf32, #tpu.memory_space<vmem>>, vector<16x1xf32>
    %cst_19 = arith.constant 0.000000e+00 : f32
    %39 = vector.broadcast %cst_19 : f32 to vector<16x128xf32>
    %40 = arith.select %15, %5, %39 : vector<16x128xi1>, vector<16x128xf32>
    %cst_20 = arith.constant dense<0.000000e+00> : vector<16xf32>
    %41 = vector.multi_reduction <add>, %40, %cst_20 [1] : vector<16x128xf32> to vector<16xf32>
    %42 = vector.shape_cast %41 : vector<16xf32> to vector<16x1xf32>
    %43 = arith.addf %38, %42 : vector<16x1xf32>
    %c0_21 = arith.constant 0 : index
    %c0_22 = arith.constant 0 : index
    %44 = vector.load %arg10[%c0_21, %c0_22] : memref<16x1xf32, #tpu.memory_space<vmem>>, vector<16x1xf32>
    tpu.vector_store %arg10[%c0_21, %c0_22], %43 {strides = array<i32>} : memref<16x1xf32, #tpu.memory_space<vmem>>, vector<16x1xf32>,
    %c0_i32_23 = arith.constant 0 : i32
    %45 = arith.cmpi eq, %arg2, %c0_i32_23 : i32
    %46 = arith.extui %45 : i1 to i32
    %c0_i32_24 = arith.constant 0 : i32
    %47 = arith.cmpi ne, %46, %c0_i32_24 : i32
    scf.if %47 {
      %c0_25 = arith.constant 0 : index
      %c0_26 = arith.constant 0 : index
      %48 = vector.load %arg8[%c0_25, %c0_26] : memref<16x1xf32, #tpu.memory_space<vmem>>, vector<16x1xf32>
      %c0_27 = arith.constant 0 : index
      %c0_28 = arith.constant 0 : index
      %49 = vector.load %arg9[%c0_27, %c0_28] : memref<16x1xf32, #tpu.memory_space<vmem>>, vector<16x1xf32>
      %50 = math.log %49 : vector<16x1xf32>
      %51 = arith.addf %48, %50 : vector<16x1xf32>
      %c0_29 = arith.constant 0 : index
      %c0_30 = arith.constant 0 : index
      %c0_31 = arith.constant 0 : index
      %52 = vector.load %arg6[%c0_29, %c0_30, %c0_31] : memref<1x16x1xf32, #tpu.memory_space<vmem>>, vector<1x16x1xf32>
      %53 = vector.shape_cast %52 : vector<1x16x1xf32> to vector<16x1xf32>
      %54 = vector.shape_cast %51 : vector<16x1xf32> to vector<1x16x1xf32>
      tpu.vector_store %arg6[%c0_29, %c0_30, %c0_31], %54 {strides = array<i32>} : memref<1x16x1xf32, #tpu.memory_space<vmem>>, vector<1x16x1xf32>,
      %c0_32 = arith.constant 0 : index
      %c0_33 = arith.constant 0 : index
      %55 = vector.load %arg10[%c0_32, %c0_33] : memref<16x1xf32, #tpu.memory_space<vmem>>, vector<16x1xf32>
      %c0_34 = arith.constant 0 : index
      %c0_35 = arith.constant 0 : index
      %c0_36 = arith.constant 0 : index
      %56 = vector.load %arg7[%c0_34, %c0_35, %c0_36] : memref<1x16x1xf32, #tpu.memory_space<vmem>>, vector<1x16x1xf32>
      %57 = vector.shape_cast %56 : vector<1x16x1xf32> to vector<16x1xf32>
      %58 = vector.shape_cast %55 : vector<16x1xf32> to vector<1x16x1xf32>
      tpu.vector_store %arg7[%c0_34, %c0_35, %c0_36], %58 {strides = array<i32>} : memref<1x16x1xf32, #tpu.memory_space<vmem>>, vector<1x16x1xf32>,
    } else {
    }
    return
  }
  func.func @transform_0(%arg0: i32, %arg1: i32, %arg2: i32) -> (i32, i32) {
    %c0_i32 = arith.constant 0 : i32
    %c0_i32_0 = arith.constant 0 : i32
    return %arg0, %c0_i32 : i32, i32
  }
  func.func @transform_1(%arg0: i32, %arg1: i32, %arg2: i32) -> (i32, i32) {
    %c1_i32 = arith.constant 1 : i32
    %0 = arith.muli %arg1, %c1_i32 : i32
    %1 = arith.addi %0, %arg2 : i32
    %c0_i32 = arith.constant 0 : i32
    %2 = arith.minsi %1, %c0_i32 : i32
    %c0_i32_0 = arith.constant 0 : i32
    %c0_i32_1 = arith.constant 0 : i32
    return %2, %c0_i32_0 : i32, i32
  }
  func.func @transform_2(%arg0: i32, %arg1: i32, %arg2: i32) -> (i32, i32) {
    %c0_i32 = arith.constant 0 : i32
    %c0_i32_0 = arith.constant 0 : i32
    return %arg0, %c0_i32 : i32, i32
  }
  func.func @transform_3(%arg0: i32, %arg1: i32, %arg2: i32) -> (i32, i32, i32) {
    %c0_i32 = arith.constant 0 : i32
    %c0_i32_0 = arith.constant 0 : i32
    return %arg1, %arg0, %c0_i32 : i32, i32, i32
  }
  func.func @transform_4(%arg0: i32, %arg1: i32, %arg2: i32) -> (i32, i32, i32) {
    %c0_i32 = arith.constant 0 : i32
    %c0_i32_0 = arith.constant 0 : i32
    return %arg1, %arg0, %c0_i32 : i32, i32, i32
  }
}

</mosaic_0001>

<llo_original>
// kernel: tpu_custom_call.1
$region0: #{tpu_custom_call.1}
  #allocation0 [shape = 'u32[]', space=smem, size = 0x4, offset = 0x4, fixed_abs, tag = 'smem constant byte address 0x4 - core index']
  #allocation1 [shape = 'u32[144,128]{1,0:T(1,128)}', space=vmem, size = 0x12000, scoped, tag = 'internal scratch']
  #allocation2 [shape = 'f32[16,1]{1,0:T(8,128)}', space=vmem, size = 0x2000, scoped, tag = 'scratch operand']
  #allocation3 [shape = 'f32[16,1]{1,0:T(8,128)}', space=vmem, size = 0x2000, scoped, tag = 'scratch operand']
  #allocation4 [shape = 'f32[16,1]{1,0:T(8,128)}', space=vmem, size = 0x2000, scoped, tag = 'scratch operand']
  #allocation5 [shape = 'bf16[16,128]{1,0:T(16,128)(2,1)}', space=vmem, size = 0x1000, scoped, tag = 'scratch operand']
  %s0 = inlined_call_operand.vmem [shape: f32[8,128], index: 0, kind: input, shape index: {}]
  %s1 = inlined_call_operand.hbm [shape: bf16[16,128], index: 1, kind: input, shape index: {}]
  %s2 = inlined_call_operand.vmem [shape: s32[8,1], index: 2, kind: input, shape index: {}]
  %s3 = inlined_call_operand.vmem [shape: f32[1,8,1], index: 3, kind: output, shape index: {0}]
  %s4 = inlined_call_operand.vmem [shape: f32[1,8,1], index: 4, kind: output, shape index: {1}]
  %5 = xla_tuple %s3, %s4
  %s6 = sld [smem:[#allocation0]]
  $region110: #{tpu_custom_call.1} parent=0
    _
  %s8 = ssub.s32 1, %s6
  %s9 = scalar_select 0, %s8, %s6
  $region1: #{tpu_custom_call.1} parent=0
    #allocation6 [shape = 'u8[32768]{0}', space=vmem, size = 0x8000, scoped, tag = 'input window, operand 1, single buffered']
    #allocation7 [shape = 's32[1]{0}', space=sflag, size = 0x4, scoped, tag = 'scoped memory for tpu_custom_call.1']
    #allocation8 [shape = 'u8[8192]{0}', space=vmem, size = 0x2000, scoped, tag = 'output window, operand 0, single buffered']
    #allocation9 [shape = 'u8[8192]{0}', space=vmem, size = 0x2000, scoped, tag = 'output window, operand 1, single buffered']
    %10 = vsyncpa [#allocation7], 0
    // Predicated region
    $region2: #{tpu_custom_call.1} parent=1 // pred_check
      _
    $region3: #{tpu_custom_call.1} parent=1 // pred_check_branch
      %12 = sbr.rel (0) target = $region5
    $region4: #{tpu_custom_call.1} parent=1 // pred_region
      _
    $region5: #{tpu_custom_call.1} parent=1 // pred_fallthru
      _
    // Predicated region
    $region6: #{tpu_custom_call.1} parent=1 // pred_check
      _
    $region7: #{tpu_custom_call.1} parent=1 // pred_check_branch
      %14 = sbr.rel (0) target = $region9
    $region8: #{tpu_custom_call.1} parent=1 // pred_region
      %s15 = sadd.s32 0, 0
      %p16 = scmp.lt.s32.totalorder %s15, 0
      %s17 = scalar_select %p16, %s15, 0
      %s18 = smul.u32 16, %s17
      %s19 = ssub.s32 2, %s18
      %s20 = smul.u32 64, %s19
      %s22 = ssub.s32 1024, %s20
      %23 = vsyncadd [#allocation7], %s22
      %p24 = scmp.ne.s32.totalorder 0, %s20
      %s25 = smul.addr %s18, 64
      %s26 = scalar_lea.hbm %s1, %s25
      %s27 = smul.u32 4, %s19
      %s28 = sshll.u32 [#allocation6], 4
      %s29 = int_to_ptr.vmem [resolvable:$true] %s28
      %s30 = sshll.u32 %s27, 4
      %34 = dma.hbm_to_vmem [thread:$0]  (%p24), %s26, %s30, %s29, [#allocation7], 64, 64, 4
    $region9: #{tpu_custom_call.1} parent=1 // pred_fallthru
      _
    // Predicated region
    $region10: #{tpu_custom_call.1} parent=1 // pred_check
      _
    $region11: #{tpu_custom_call.1} parent=1 // pred_check_branch
      %36 = sbr.rel (0) target = $region13
    $region12: #{tpu_custom_call.1} parent=1 // pred_region
      _
    $region13: #{tpu_custom_call.1} parent=1 // pred_fallthru
      _
    // Predicated region
    $region14: #{tpu_custom_call.1} parent=1 // pred_check
      _
    $region15: #{tpu_custom_call.1} parent=1 // pred_check_branch
      %38 = sbr.rel (0) target = $region17
    $region16: #{tpu_custom_call.1} parent=1 // pred_region
      %39 = dma.done [#allocation7], 1024
    $region17: #{tpu_custom_call.1} parent=1 // pred_fallthru
      _
    %s40 = sadd.s32 0, 0
    %p41 = scmp.lt.s32.totalorder %s40, 0
    %s42 = scalar_select %p41, %s40, 0
    %s43 = smul.u32 16, %s42
    %s44 = ssub.s32 2, %s43
    %s45 = smul.u32 64, %s44
    %p47 = scmp.eq.s32.totalorder 0, 0
    // Predicated region
    $region18: #{tpu_custom_call.1} parent=1 // pred_check
      %p48 = pneg %p47
    $region19: #{tpu_custom_call.1} parent=1 // pred_check_branch
      %50 = sbr.rel (%p48) target = $region21
    $region20: #{tpu_custom_call.1} parent=1 // pred_region
      %v51 = vld [vmem:[%s0] sm:$0xff]
      %v52 = vld [vmem:[%s0 + $0x8] sm:$0xff]
      %v53 = vmul.f32 %v51, %v51
      %v54 = vmul.f32 %v52, %v52
      %55 = vadd.xlane.f32.xlu0 %v53
      %v56 = vpop.xlane.xlu0 %55
      %57 = vadd.xlane.f32.xlu0 %v54
      %v58 = vpop.xlane.xlu0 %57
      %v59 = vmax.f32 %v56, 1e-24
      %v60 = vmax.f32 %v58, 1e-24
      %v61 = vrsqrt.pop %v59
      %v62 = vrsqrt.pop %v60
      %v63 = vmul.f32 %v61, 20.0
      %v64 = vmul.f32 %v62, 20.0
      %v65 = vmul.f32 %v51, %v63
      %v66 = vmul.f32 %v52, %v64
      %v67 = vpack.c.bf16 %v66, %v65
      %68 = vst [vmem:[#allocation5] sm:$0xff] %v67
      %vm69 = vcmask 7168
      %70 = vst.msk [vmem:[#allocation2] sm:$0xff] %vm69, -1e+30
      %71 = vst.msk [vmem:[#allocation2 + $0x8] sm:$0xff] %vm69, -1e+30
      %72 = vst.msk [vmem:[#allocation3] sm:$0xff] %vm69, 0.0
      %73 = vst.msk [vmem:[#allocation3 + $0x8] sm:$0xff] %vm69, 0.0
      %74 = vst.msk [vmem:[#allocation4] sm:$0xff] %vm69, 0.0
      %75 = vst.msk [vmem:[#allocation4 + $0x8] sm:$0xff] %vm69, 0.0
    $region21: #{tpu_custom_call.1} parent=1 // pred_fallthru
      _
    %v76 = vld [vmem:[#allocation5] sm:$0xff]
    %v77 = vld [vmem:[#allocation6] sm:$0xf]
    %v78 = vld [vmem:[#allocation6 + $0x4] sm:$0xf]
    %v79 = vld [vmem:[#allocation6 + $0x8] sm:$0xf]
    %v80 = vld [vmem:[#allocation6 + $0xc] sm:$0xf]
    %v81 = vld [vmem:[#allocation6 + $0x10] sm:$0xf]
    %v82 = vld [vmem:[#allocation6 + $0x14] sm:$0xf]
    %v83 = vld [vmem:[#allocation6 + $0x18] sm:$0xf]
    %v84 = vld [vmem:[#allocation6 + $0x1c] sm:$0xf]
    %v85 = vld [vmem:[#allocation6 + $0x20] sm:$0xf]
    %v86 = vld [vmem:[#allocation6 + $0x24] sm:$0xf]
    %v87 = vld [vmem:[#allocation6 + $0x28] sm:$0xf]
    %v88 = vld [vmem:[#allocation6 + $0x2c] sm:$0xf]
    %v89 = vld [vmem:[#allocation6 + $0x30] sm:$0xf]
    %v90 = vld [vmem:[#allocation6 + $0x34] sm:$0xf]
    %v91 = vld [vmem:[#allocation6 + $0x38] sm:$0xf]
    %v92 = vld [vmem:[#allocation6 + $0x3c] sm:$0xf]
    %v109 = vunpack.c.l.b16 %v77
    %v110 = vunpack.c.l.b16 %v78
    %v111 = vunpack.c.l.b16 %v79
    %v112 = vunpack.c.l.b16 %v80
    %v113 = vunpack.c.l.b16 %v81
    %v114 = vunpack.c.l.b16 %v82
    %v115 = vunpack.c.l.b16 %v83
    %v116 = vunpack.c.l.b16 %v84
    %v117 = vunpack.c.l.b16 %v85
    %v118 = vunpack.c.l.b16 %v86
    %v119 = vunpack.c.l.b16 %v87
    %v120 = vunpack.c.l.b16 %v88
    %v121 = vunpack.c.l.b16 %v89
    %v122 = vunpack.c.l.b16 %v90
    %v123 = vunpack.c.l.b16 %v91
    %v124 = vunpack.c.l.b16 %v92
    %v125 = vpack.c.b16 %v110, %v109
    %v126 = vpack.c.b16 %v112, %v111
    %v127 = vpack.c.b16 %v114, %v113
    %v128 = vpack.c.b16 %v116, %v115
    %v129 = vpack.c.b16 %v118, %v117
    %v130 = vpack.c.b16 %v120, %v119
    %v131 = vpack.c.b16 %v122, %v121
    %v132 = vpack.c.b16 %v124, %v123
    %141 = vmatprep.subr.bf16.mxu0 0
    %142 = vmatpush1.bf16.xpose.msra.mxu0 %v125
    %143 = vmatprep.subr.bf16.mxu0 0
    %144 = vmatpush1.bf16.xpose.msra.mxu0 %v126
    %145 = vmatprep.subr.bf16.mxu0 0
    %146 = vmatpush1.bf16.xpose.msra.mxu0 %v127
    %147 = vmatprep.subr.bf16.mxu0 0
    %148 = vmatpush1.bf16.xpose.msra.mxu0 %v128
    %149 = vmatprep.subr.bf16.mxu0 0
    %150 = vmatpush1.bf16.xpose.msra.mxu0 %v129
    %151 = vmatprep.subr.bf16.mxu0 0
    %152 = vmatpush1.bf16.xpose.msra.mxu0 %v130
    %153 = vmatprep.subr.bf16.mxu0 0
    %154 = vmatpush1.bf16.xpose.msra.mxu0 %v131
    %155 = vmatprep.subr.bf16.mxu0 0
    %156 = vmatpush1.bf16.xpose.msra.mxu0 %v132
    %157 = vmatprep.subr.bf16.mxu0 0
    %158 = vmatpush1.bf16.xpose.msra.mxu0 0
    %159 = vmatprep.subr.bf16.mxu0 0
    %160 = vmatpush1.bf16.xpose.msra.mxu0 0
    %161 = vmatprep.subr.bf16.mxu0 0
    %162 = vmatpush1.bf16.xpose.msra.mxu0 0
    %163 = vmatprep.subr.bf16.mxu0 0
    %164 = vmatpush1.bf16.xpose.msra.mxu0 0
    %165 = vmatprep.subr.bf16.mxu0 0
    %166 = vmatpush1.bf16.xpose.msra.mxu0 0
    %167 = vmatprep.subr.bf16.mxu0 0
    %168 = vmatpush1.bf16.xpose.msra.mxu0 0
    %169 = vmatprep.subr.bf16.mxu0 0
    %170 = vmatpush1.bf16.xpose.msra.mxu0 0
    %171 = vmatprep.subr.bf16.mxu0 0
    %172 = vmatpush1.bf16.xpose.msra.mxu0 0
    %173 = vmatprep.mubr.bf16.mxu0 0
    %174 = vmatmul.mubr.bf16.gmra.mrb[0].mxu0 %v76
    %v175 = vpop.f32.mrb[0].mxu0
    %v176 = vadd.f32 0.0, %v175
    %v177 = vpop.f32.mrb[0].mxu0
    %v178 = vpop.f32.mrb[0].mxu0
    %v179 = vadd.f32 0.0, %v178
    %v180 = vpop.f32.mrb[0].mxu0
    %181 = vdwg.mxu0
    %s182 = sadd.s32 0, 0
    %v183 = vlaneseq
    %v184 = vand.u32 %v183, 127
    %s185 = smul.u32 %s182, 128
    %v186 = vstv %s185
    %v187 = vadd.s32 %v184, %v186
    %v188 = vld [vmem:[%s2] sm:$0xff]
    %v189 = vld [vmem:[%s2 + $0x8] sm:$0xff]
    %190 = vset.pattern.permute.xlu0 0
    %191 = vperm.xlu0 %190, %v188
    %v192 = vpop.permute.xlu0 %191
    %193 = vset.pattern.permute.xlu0 0
    %194 = vperm.xlu0 %193, %v189
    %v195 = vpop.permute.xlu0 %194
    %vm196 = vcmp.eq.s32.totalorder %v187, %v192
    %vm197 = vcmp.eq.s32.totalorder %v187, %v195
    %vm198 = vcmp.lt.s32.totalorder %v187, 16
    %v199 = vsel %vm198, 1, 0
    %vm200 = vcmp.eq.s32.totalorder %v199, 1
    %v201 = vsel %vm200, %v176, -1e+30
    %v202 = vsel %vm200, %v179, -1e+30
    %v203 = vld [vmem:[#allocation2] sm:$0xff]
    %v204 = vld [vmem:[#allocation2 + $0x8] sm:$0xff]
    %205 = vmax.xlane.f32.xlu0 %v201
    %v206 = vpop.xlane.xlu0 %205
    %207 = vmax.xlane.f32.xlu0 %v202
    %v208 = vpop.xlane.xlu0 %207
    %v209 = vmax.f32 %v203, %v206
    %v210 = vmax.f32 %v204, %v208
    %v211 = vld [vmem:[#allocation3] sm:$0xff]
    %v212 = vld [vmem:[#allocation3 + $0x8] sm:$0xff]
    %v213 = vsub.f32 %v203, %v209
    %v214 = vsub.f32 %v204, %v210
    %v215 = vmul.f32 %v213, 1.442695
    %v216 = vpow.pop %v215
    %v217 = vmul.f32 %v214, 1.442695
    %v218 = vpow.pop %v217
    %v219 = vmul.f32 %v211, %v216
    %v220 = vmul.f32 %v212, %v218
    %222 = vset.pattern.permute.xlu0 0
    %223 = vperm.xlu0 %222, %v209
    %v224 = vpop.permute.xlu0 %223
    %227 = vset.pattern.permute.xlu0 0
    %228 = vperm.xlu0 %227, %v210
    %v229 = vpop.permute.xlu0 %228
    %v231 = vsub.f32 %v201, %v224
    %v232 = vsub.f32 %v202, %v229
    %v233 = vmul.f32 %v231, 1.442695
    %v234 = vpow.pop %v233
    %v235 = vmul.f32 %v232, 1.442695
    %v236 = vpow.pop %v235
    %237 = vadd.xlane.f32.xlu0 %v234
    %v238 = vpop.xlane.xlu0 %237
    %239 = vadd.xlane.f32.xlu0 %v236
    %v240 = vpop.xlane.xlu0 %239
    %v241 = vadd.f32 %v219, %v238
    %v242 = vadd.f32 %v220, %v240
    %vm243 = vcmask 7168
    %244 = vst.msk [vmem:[#allocation3] sm:$0xff] %vm243, %v241
    %245 = vst.msk [vmem:[#allocation3 + $0x8] sm:$0xff] %vm243, %v242
    %246 = vst.msk [vmem:[#allocation2] sm:$0xff] %vm243, %v209
    %247 = vst.msk [vmem:[#allocation2 + $0x8] sm:$0xff] %vm243, %v210
    %v248 = vld [vmem:[#allocation4] sm:$0xff]
    %v249 = vld [vmem:[#allocation4 + $0x8] sm:$0xff]
    %v250 = vsel %vm196, %v176, 0.0
    %v251 = vsel %vm197, %v179, 0.0
    %252 = vadd.xlane.f32.xlu0 %v250
    %v253 = vpop.xlane.xlu0 %252
    %254 = vadd.xlane.f32.xlu0 %v251
    %v255 = vpop.xlane.xlu0 %254
    %v256 = vadd.f32 %v248, %v253
    %v257 = vadd.f32 %v249, %v255
    %258 = vst.msk [vmem:[#allocation4] sm:$0xff] %vm243, %v256
    %259 = vst.msk [vmem:[#allocation4 + $0x8] sm:$0xff] %vm243, %v257
    // Predicated region
    $region22: #{tpu_custom_call.1} parent=1 // pred_check
      %p260 = pneg %p47
    $region23: #{tpu_custom_call.1} parent=1 // pred_check_branch
      %262 = sbr.rel (%p260) target = $region25
    $region24: #{tpu_custom_call.1} parent=1 // pred_region
      %v263 = vld [vmem:[#allocation2] sm:$0xff]
      %v264 = vld [vmem:[#allocation2 + $0x8] sm:$0xff]
      %v265 = vld [vmem:[#allocation3] sm:$0xff]
      %v266 = vld [vmem:[#allocation3 + $0x8] sm:$0xff]
      %v267 = vlog2.pop %v265
      %v268 = vmul.f32 %v267, 0.6931472
      %v269 = vlog2.pop %v266
      %v270 = vmul.f32 %v269, 0.6931472
      %v271 = vadd.f32 %v263, %v268
      %v272 = vadd.f32 %v264, %v270
      %273 = vst.msk [vmem:[#allocation8] sm:$0xff] %vm243, %v271
      %274 = vst.msk [vmem:[#allocation8 + $0x8] sm:$0xff] %vm243, %v272
      %v275 = vld [vmem:[#allocation4] sm:$0xff]
      %v276 = vld [vmem:[#allocation4 + $0x8] sm:$0xff]
      %277 = vst.msk [vmem:[#allocation9] sm:$0xff] %vm243, %v275
      %278 = vst.msk [vmem:[#allocation9 + $0x8] sm:$0xff] %vm243, %v276
    $region25: #{tpu_custom_call.1} parent=1 // pred_fallthru
      _
    // Predicated region
    $region26: #{tpu_custom_call.1} parent=1 // pred_check
      _
    $region27: #{tpu_custom_call.1} parent=1 // pred_check_branch
      %280 = sbr.rel (0) target = $region29
    $region28: #{tpu_custom_call.1} parent=1 // pred_region
      // Predicated region
      $region30: #{tpu_custom_call.1} parent=28 // pred_check
        _
      $region31: #{tpu_custom_call.1} parent=28 // pred_check_branch
        %282 = sbr.rel (0) target = $region33
      $region32: #{tpu_custom_call.1} parent=28 // pred_region
        // Predicated region
        $region34: #{tpu_custom_call.1} parent=32 // pred_check
          _
        $region35: #{tpu_custom_call.1} parent=32 // pred_check_branch
          %284 = sbr.rel (0) target = $region37
        $region36: #{tpu_custom_call.1} parent=32 // pred_region
          // Predicated region
          $region49: #{tpu_custom_call.1} parent=36 // pred_check
            _
          $region50: #{tpu_custom_call.1} parent=36 // pred_check_branch
            %299 = sbr.rel (0) target = $region52
          $region51: #{tpu_custom_call.1} parent=36 // pred_region
            loop: start=0, step=1, limit=1
            $region53: #{tpu_custom_call.1} parent=51 // loop_pre_header
              _
            $region54: #{tpu_custom_call.1} parent=51 // loop_header
              %s301 = sphi 0, %s305
              %p302 = scmp.ge.s32.totalorder %s301, 1
              %s306 = sphi [#allocation8], [#allocation8]
              %s307 = sphi %s3, %s3
            $region55: #{tpu_custom_call.1} parent=51 // loop_header_branch
              %304 = sbr.rel (%p302) target = $region59
            $region56: #{tpu_custom_call.1} parent=51 // loop_body
              %v308 = vld [vmem:[%s306] sm:$0xff]
              %309 = vst [vmem:[%s307] sm:$0xff] %v308
            $region57: #{tpu_custom_call.1} parent=51 // loop_footer
              %s305 = sadd.s32 1, %s301
            $region58: #{tpu_custom_call.1} parent=51 // loop_footer_branch
              %300 = sbr.rel target = $region54
            $region59: #{tpu_custom_call.1} parent=51 // loop_exit
              _
          $region52: #{tpu_custom_call.1} parent=36 // pred_fallthru
            _
          // Predicated region
          $region60: #{tpu_custom_call.1} parent=36 // pred_check
            _
          $region61: #{tpu_custom_call.1} parent=36 // pred_check_branch
            %311 = sbr.rel target = $region63
          $region62: #{tpu_custom_call.1} parent=36 // pred_region
            _
          $region63: #{tpu_custom_call.1} parent=36 // pred_fallthru
            _
        $region37: #{tpu_custom_call.1} parent=32 // pred_fallthru
          _
        // Predicated region
        $region38: #{tpu_custom_call.1} parent=32 // pred_check
          _
        $region39: #{tpu_custom_call.1} parent=32 // pred_check_branch
          %286 = sbr.rel target = $region41
        $region40: #{tpu_custom_call.1} parent=32 // pred_region
          loop: start=0, step=1, limit=1
          $region42: #{tpu_custom_call.1} parent=40 // loop_pre_header
            _
          $region43: #{tpu_custom_call.1} parent=40 // loop_header
            %s289 = sphi 0, %s293
            %p290 = scmp.ge.s32.totalorder %s289, 1
            %s294 = sphi [#allocation8], [#allocation8]
            %s295 = sphi %s3, %s3
          $region44: #{tpu_custom_call.1} parent=40 // loop_header_branch
            %292 = sbr.rel (%p290) target = $region48
          $region45: #{tpu_custom_call.1} parent=40 // loop_body
            %v296 = vld [vmem:[%s294] sm:$0xff]
            %297 = vst [vmem:[%s295] sm:$0xff] %v296
          $region46: #{tpu_custom_call.1} parent=40 // loop_footer
            %s293 = sadd.s32 1, %s289
          $region47: #{tpu_custom_call.1} parent=40 // loop_footer_branch
            %288 = sbr.rel target = $region43
          $region48: #{tpu_custom_call.1} parent=40 // loop_exit
            _
        $region41: #{tpu_custom_call.1} parent=32 // pred_fallthru
          _
      $region33: #{tpu_custom_call.1} parent=28 // pred_fallthru
        _
      %312 = vnop
    $region29: #{tpu_custom_call.1} parent=1 // pred_fallthru
      _
    // Predicated region
    $region64: #{tpu_custom_call.1} parent=1 // pred_check
      _
    $region65: #{tpu_custom_call.1} parent=1 // pred_check_branch
      %314 = sbr.rel (0) target = $region67
    $region66: #{tpu_custom_call.1} parent=1 // pred_region
      // Predicated region
      $region68: #{tpu_custom_call.1} parent=66 // pred_check
        _
      $region69: #{tpu_custom_call.1} parent=66 // pred_check_branch
        %316 = sbr.rel (0) target = $region71
      $region70: #{tpu_custom_call.1} parent=66 // pred_region
        // Predicated region
        $region72: #{tpu_custom_call.1} parent=70 // pred_check
          _
        $region73: #{tpu_custom_call.1} parent=70 // pred_check_branch
          %318 = sbr.rel (0) target = $region75
        $region74: #{tpu_custom_call.1} parent=70 // pred_region
          // Predicated region
          $region87: #{tpu_custom_call.1} parent=74 // pred_check
            _
          $region88: #{tpu_custom_call.1} parent=74 // pred_check_branch
            %333 = sbr.rel (0) target = $region90
          $region89: #{tpu_custom_call.1} parent=74 // pred_region
            loop: start=0, step=1, limit=1
            $region91: #{tpu_custom_call.1} parent=89 // loop_pre_header
              _
            $region92: #{tpu_custom_call.1} parent=89 // loop_header
              %s335 = sphi 0, %s339
              %p336 = scmp.ge.s32.totalorder %s335, 1
              %s340 = sphi [#allocation9], [#allocation9]
              %s341 = sphi %s4, %s4
            $region93: #{tpu_custom_call.1} parent=89 // loop_header_branch
              %338 = sbr.rel (%p336) target = $region97
            $region94: #{tpu_custom_call.1} parent=89 // loop_body
              %v342 = vld [vmem:[%s340] sm:$0xff]
              %343 = vst [vmem:[%s341] sm:$0xff] %v342
            $region95: #{tpu_custom_call.1} parent=89 // loop_footer
              %s339 = sadd.s32 1, %s335
            $region96: #{tpu_custom_call.1} parent=89 // loop_footer_branch
              %334 = sbr.rel target = $region92
            $region97: #{tpu_custom_call.1} parent=89 // loop_exit
              _
          $region90: #{tpu_custom_call.1} parent=74 // pred_fallthru
            _
          // Predicated region
          $region98: #{tpu_custom_call.1} parent=74 // pred_check
            _
          $region99: #{tpu_custom_call.1} parent=74 // pred_check_branch
            %345 = sbr.rel target = $region101
          $region100: #{tpu_custom_call.1} parent=74 // pred_region
            _
          $region101: #{tpu_custom_call.1} parent=74 // pred_fallthru
            _
        $region75: #{tpu_custom_call.1} parent=70 // pred_fallthru
          _
        // Predicated region
        $region76: #{tpu_custom_call.1} parent=70 // pred_check
          _
        $region77: #{tpu_custom_call.1} parent=70 // pred_check_branch
          %320 = sbr.rel target = $region79
        $region78: #{tpu_custom_call.1} parent=70 // pred_region
          loop: start=0, step=1, limit=1
          $region80: #{tpu_custom_call.1} parent=78 // loop_pre_header
            _
          $region81: #{tpu_custom_call.1} parent=78 // loop_header
            %s323 = sphi 0, %s327
            %p324 = scmp.ge.s32.totalorder %s323, 1
            %s328 = sphi [#allocation9], [#allocation9]
            %s329 = sphi %s4, %s4
          $region82: #{tpu_custom_call.1} parent=78 // loop_header_branch
            %326 = sbr.rel (%p324) target = $region86
          $region83: #{tpu_custom_call.1} parent=78 // loop_body
            %v330 = vld [vmem:[%s328] sm:$0xff]
            %331 = vst [vmem:[%s329] sm:$0xff] %v330
          $region84: #{tpu_custom_call.1} parent=78 // loop_footer
            %s327 = sadd.s32 1, %s323
          $region85: #{tpu_custom_call.1} parent=78 // loop_footer_branch
            %322 = sbr.rel target = $region81
          $region86: #{tpu_custom_call.1} parent=78 // loop_exit
            _
        $region79: #{tpu_custom_call.1} parent=70 // pred_fallthru
          _
      $region71: #{tpu_custom_call.1} parent=66 // pred_fallthru
        _
      %346 = vnop
    $region67: #{tpu_custom_call.1} parent=1 // pred_fallthru
      _
    // Predicated region
    $region102: #{tpu_custom_call.1} parent=1 // pred_check
      _
    $region103: #{tpu_custom_call.1} parent=1 // pred_check_branch
      %348 = sbr.rel (0) target = $region105
    $region104: #{tpu_custom_call.1} parent=1 // pred_region
      _
    $region105: #{tpu_custom_call.1} parent=1 // pred_fallthru
      _
    // Predicated region
    $region106: #{tpu_custom_call.1} parent=1 // pred_check
      _
    $region107: #{tpu_custom_call.1} parent=1 // pred_check_branch
      %350 = sbr.rel (0) target = $region109
    $region108: #{tpu_custom_call.1} parent=1 // pred_region
      _
    $region109: #{tpu_custom_call.1} parent=1 // pred_fallthru
      _
    %351 = vsyncpa [#allocation7], 1

</llo_original>
